<compile_context>
chip_gen: v7x
topology: tpu7x:2x2x1
jax: 0.10.0
libtpu: 0.0.40
codegen_flags: <defaults>
</compile_context>

<pallas_src>
import functools
import math

import jax
import jax.numpy as jnp
from jax import lax
from jax.experimental import pallas as pl
from jax.experimental.pallas import tpu as pltpu


def _round_up(v, m):
    return ((v + m - 1) // m) * m


def _bucket_from_n(n, *, causal, num_buckets, max_distance, boundary_shift=0.0):
    """T5 relative-position bucket, with n = q_pos - k_pos = -relative_position.

    Mirrors torch's _relative_position_bucket op-for-op (unfolded log formula).
    `boundary_shift` is only used by the test reference to tolerate ulp-level
    differences right at bucket boundaries.
    """
    nb = num_buckets
    if not causal:
        nb //= 2
        ret = (n < 0).astype(jnp.int32) * nb
        n = jnp.abs(n)
    else:
        ret = None
        n = jnp.maximum(n, 0)
    max_exact = nb // 2
    is_small = n < max_exact
    # log(0) guarded with max(n, 1); those lanes are overridden by is_small.
    n_f = jnp.maximum(n, 1).astype(jnp.float32)
    t = (jnp.log(n_f / max_exact)
         / math.log(max_distance / max_exact)
         * (nb - max_exact))
    if boundary_shift:
        t = t + boundary_shift
    val_if_large = max_exact + t.astype(jnp.int32)
    val_if_large = jnp.minimum(val_if_large, nb - 1)
    bucket = jnp.where(is_small, n, val_if_large)
    if ret is not None:
        bucket = ret + bucket
    return bucket


def _t5_bias_kernel(emb_ref, out_ref, *, causal, num_buckets, max_distance,
                    tm, tn, lpad, use_roll):
    r0 = pl.program_id(0) * tm          # global query-row offset of this tile
    c0 = pl.program_id(1) * tn          # global key-col  offset of this tile

    nb = num_buckets if causal else num_buckets // 2

    # ---- tile-level fast path: bucket is constant over the whole tile ------
    # NOTE: these thresholds must stay in sync with _bucket_from_n.
    n_min = r0 - (c0 + (tn - 1))
    n_max = (r0 + (tm - 1)) - c0
    far_lo = n_min >= max_distance                 # every n saturates (below diag)
    if causal:
        far_hi = n_max <= 0                        # every n clamps to 0
        far_hi_bucket = 0
    else:
        far_hi = n_max <= -max_distance            # every n saturates (above diag)
        far_hi_bucket = nb + nb - 1
    far_lo_bucket = nb - 1
    is_const = jnp.logical_or(far_lo, far_hi)

    @pl.when(is_const)
    def _const_tile():
        val = jnp.where(far_lo, emb_ref[far_lo_bucket], emb_ref[far_hi_bucket])
        out_ref[...] = jnp.full((tm, tn), val, jnp.float32)

    @pl.when(jnp.logical_not(is_const))
    def _compute_tile():
        d = r0 - c0                                # single scalar offset

        if use_roll:
            # 1-D strip covering every diagonal of this tile:
            #   out[s, t] = f(d + s - t)  ==>  strip[m] = f(d + tm - 1 - m)
            #   so out[s, t] = strip[t + (tm - 1 - s)].
            m = lax.broadcasted_iota(jnp.int32, (1, lpad), 1)
            n = (d + (tm - 1)) - m                 # (1, lpad)
        else:
            # Fallback: per-element compute (old path, smaller tiles).
            n = (d
                 + lax.broadcasted_iota(jnp.int32, (tm, tn), 0)
                 - lax.broadcasted_iota(jnp.int32, (tm, tn), 1))

        bucket = _bucket_from_n(n, causal=causal, num_buckets=num_buckets,
                                max_distance=max_distance)

        # Embedding lookup as a balanced range tree over SMEM scalars (scale
        # already folded into the table in the wrapper).
        def build(lo, hi):
            if hi - lo == 1:
                return emb_ref[lo]
            mid = (lo + hi) // 2
            return jnp.where(bucket >= mid, build(mid, hi), build(lo, mid))

        vals = build(0, num_buckets)               # f32, same shape as bucket

        if use_roll:
            # Toeplitz materialization with one XLU strided roll: row s needs
            # the lane window of `vals` starting at (tm-1-s).  With
            #   rolled[s, i] = bcast[s, (i - (shift + s)) mod lpad]
            # and shift = lpad - tm + 1, rolled[s, t] = vals[0, t + tm - 1 - s].
            bcast = jnp.broadcast_to(vals, (tm, lpad))
            rolled = pltpu.roll(bcast, lpad - tm + 1, 1,
                                stride=1, stride_axis=0)
            out_ref[...] = rolled[:, :tn]
        else:
            out_ref[...] = vals


@functools.lru_cache(maxsize=None)
def _strided_roll_ok():
    """One-time probe: strided pltpu.roll shear gives the expected Toeplitz layout."""
    try:
        tm, tn = 16, 256
        lpad = _round_up(tm + tn - 1, 128)

        def probe_kernel(o_ref):
            strip = lax.broadcasted_iota(jnp.int32, (1, lpad), 1).astype(jnp.float32)
            bcast = jnp.broadcast_to(strip, (tm, lpad))
            rolled = pltpu.roll(bcast, lpad - tm + 1, 1, stride=1, stride_axis=0)
            o_ref[...] = rolled[:, :tn]

        out = pl.pallas_call(
            probe_kernel,
            out_shape=jax.ShapeDtypeStruct((tm, tn), jnp.float32))()
        s = jnp.arange(tm, dtype=jnp.int32)[:, None]
        t = jnp.arange(tn, dtype=jnp.int32)[None, :]
        expected = (t + (tm - 1 - s)).astype(jnp.float32)
        return bool(jnp.all(out == expected))
    except Exception:
        return False


def _t5_bias_pallas(x, embedding, *, scale, causal, num_buckets, max_distance,
                    block_q, block_k, use_roll):
    i, j = int(x.shape[-2]), int(x.shape[-1])

    # Lane-dense tiles: last dim a multiple of 128, second-minor a multiple of 8.
    tm = min(block_q, _round_up(i, 8))
    tn = min(block_k, _round_up(j, 128))
    ipad = _round_up(i, tm)
    jpad = _round_up(j, tn)
    lpad = _round_up(tm + tn - 1, 128)             # strip length (lane-padded)

    # Fold the output scale into the tiny table once, outside the kernel.
    emb_flat = embedding.reshape(-1).astype(jnp.float32) * jnp.float32(scale)

    kernel = functools.partial(
        _t5_bias_kernel,
        causal=bool(causal),
        num_buckets=int(num_buckets),
        max_distance=int(max_distance),
        tm=tm, tn=tn, lpad=lpad, use_roll=bool(use_roll))

    out = pl.pallas_call(
        kernel,
        out_shape=jax.ShapeDtypeStruct((ipad, jpad), jnp.float32),
        grid=(ipad // tm, jpad // tn),
        in_specs=[pl.BlockSpec(memory_space=pltpu.MemorySpace.SMEM)],
        out_specs=pl.BlockSpec((tm, tn), lambda r, c: (r, c)),
        compiler_params=pltpu.CompilerParams(
            dimension_semantics=("parallel", "parallel"),
            vmem_limit_bytes=32 * 1024 * 1024),
    )(emb_flat)

    if ipad != i or jpad != j:
        out = out[:i, :j]
    return out


def t5_relative_position_bias(x, embedding, *, scale, causal=False,
                              num_buckets=32, max_distance=128):
    """Pallas implementation of T5RelativePositionBias.forward.

    x:         array whose last two dims are (q_len, k_len); values unused.
    embedding: (num_buckets, 1) float32 table (nn.Embedding weight).
    returns:   (q_len, k_len) float32 bias (single-head, as in the module).
    """
    if _strided_roll_ok():
        try:
            return _t5_bias_pallas(
                x, embedding, scale=scale, causal=causal,
                num_buckets=num_buckets, max_distance=max_distance,
                block_q=512, block_k=1024, use_roll=True)
        except Exception:
            pass  # fall through to the per-element kernel below
    # Fallback: per-element bucket + select tree (smaller tiles to limit VMEM).
    return _t5_bias_pallas(
        x, embedding, scale=scale, causal=causal,
        num_buckets=num_buckets, max_distance=max_distance,
        block_q=256, block_k=512, use_roll=False)


# ----------------------------- test harness ---------------------------------

def _reference(x, embedding, *, scale, causal, num_buckets, max_distance,
               boundary_shift=0.0):
    """Pure-JAX reference mirroring the PyTorch module op-for-op."""
    i, j = int(x.shape[-2]), int(x.shape[-1])
    q = jnp.arange(i, dtype=jnp.int32)[:, None]
    k = jnp.arange(j, dtype=jnp.int32)[None, :]
    n = q - k                                      # == -(k - q) == -rel_pos
    bucket = _bucket_from_n(n, causal=causal, num_buckets=num_buckets,
                            max_distance=max_distance,
                            boundary_shift=boundary_shift)
    values = embedding.reshape(-1).astype(jnp.float32)[bucket]
    return values * scale


def _check(out, x, embedding, *, scale, causal, num_buckets, max_distance,
           tol=1e-6):
    # Two references with a tiny +/- shift before the floor() tolerate ulp-level
    # log() differences exactly at bucket boundaries (e.g. |n| == 32 non-causal);
    # everywhere else lo == hi and this is a strict elementwise check.
    lo = _reference(x, embedding, scale=scale, causal=causal,
                    num_buckets=num_buckets, max_distance=max_distance,
                    boundary_shift=-1e-3)
    hi = _reference(x, embedding, scale=scale, causal=causal,
                    num_buckets=num_buckets, max_distance=max_distance,
                    boundary_shift=+1e-3)
    ok = jnp.all((jnp.abs(out - lo) <= tol) | (jnp.abs(out - hi) <= tol))
    assert bool(ok), "kernel output does not match reference"


if __name__ == "__main__":
    key = jax.random.PRNGKey(0)
    k_x, k_emb = jax.random.split(key)

    num_buckets, max_distance = 32, 128
    scale = 1.0 / math.sqrt(32.0)

    # nn.Embedding(num_buckets, 1) weight.
    embedding = jax.random.normal(k_emb, (num_buckets, 1), dtype=jnp.float32)

    # Small attention-logit-shaped input; only its trailing (i, j) shape is used.
    x = jax.random.normal(k_x, (2, 4, 16, 16), dtype=jnp.float32)

    for causal in (False, True):
        bias = jax.block_until_ready(
            t5_relative_position_bias(x, embedding, scale=scale, causal=causal,
                                      num_buckets=num_buckets,
                                      max_distance=max_distance))
        assert bias.shape == (16, 16)
        _check(bias, x, embedding, scale=scale, causal=causal,
               num_buckets=num_buckets, max_distance=max_distance)
        # No boundary-sensitive |n| at this size: also check strictly.
        ref = _reference(x, embedding, scale=scale, causal=causal,
                         num_buckets=num_buckets, max_distance=max_distance)
        assert jnp.allclose(bias, ref, atol=1e-6, rtol=1e-6)

    # Larger cases: multi-tile grid, remainder padding/cropping, the
    # constant-tile (saturated-bucket) fast path, and the strided-roll shear.
    for (qi, kj) in ((896, 896), (2048, 1536)):
        x_big = jnp.zeros((1, 1, qi, kj), dtype=jnp.float32)
        for causal in (False, True):
            bias = jax.block_until_ready(
                t5_relative_position_bias(x_big, embedding, scale=scale,
                                          causal=causal,
                                          num_buckets=num_buckets,
                                          max_distance=max_distance))
            assert bias.shape == (qi, kj)
            _check(bias, x_big, embedding, scale=scale, causal=causal,
                   num_buckets=num_buckets, max_distance=max_distance)

    print("KERNEL_OK")
</pallas_src>

<mosaic_0001>
module attributes {stable_mosaic.version = 11 : i64} {
  func.func @_t5_bias_kernel(%arg0: i32, %arg1: i32, %arg2: memref<32xf32, #tpu.memory_space<smem>>, %arg3: memref<16x128xf32, #tpu.memory_space<vmem>>) attributes {dimension_semantics = [#tpu.dimension_semantics<parallel>, #tpu.dimension_semantics<parallel>], iteration_bounds = array<i64: 1, 1>, scalar_prefetch = 0 : i64, scratch_operands = 0 : i64, tpu.core_type = #tpu.core_type<tc>, window_params = [{transform_indices = @transform_0, window_bounds = array<i64: 32>}, {transform_indices = @transform_1, window_bounds = array<i64: 16, 128>}]} {
    %c16_i32 = arith.constant 16 : i32
    %0 = arith.muli %arg0, %c16_i32 : i32
    %c128_i32 = arith.constant 128 : i32
    %1 = arith.muli %arg1, %c128_i32 : i32
    %c127_i32 = arith.constant 127 : i32
    %2 = arith.addi %1, %c127_i32 : i32
    %3 = arith.subi %0, %2 : i32
    %c15_i32 = arith.constant 15 : i32
    %4 = arith.addi %0, %c15_i32 : i32
    %5 = arith.subi %4, %1 : i32
    %c128_i32_0 = arith.constant 128 : i32
    %6 = arith.cmpi sge, %3, %c128_i32_0 : i32
    %c-128_i32 = arith.constant -128 : i32
    %7 = arith.cmpi sle, %5, %c-128_i32 : i32
    %8 = arith.ori %6, %7 : i1
    %9 = arith.extui %8 : i1 to i32
    %c0_i32 = arith.constant 0 : i32
    %10 = arith.cmpi ne, %9, %c0_i32 : i32
    scf.if %10 {
      %c15 = arith.constant 15 : index
      %14 = memref.load %arg2[%c15] : memref<32xf32, #tpu.memory_space<smem>>
      %c31 = arith.constant 31 : index
      %15 = memref.load %arg2[%c31] : memref<32xf32, #tpu.memory_space<smem>>
      %16 = arith.select %6, %14, %15 : f32
      %17 = vector.broadcast %16 : f32 to vector<16x128xf32>
      %c0 = arith.constant 0 : index
      %c0_2 = arith.constant 0 : index
      %18 = vector.load %arg3[%c0, %c0_2] : memref<16x128xf32, #tpu.memory_space<vmem>>, vector<16x128xf32>
      tpu.vector_store %arg3[%c0, %c0_2], %17 {strides = array<i32>} : memref<16x128xf32, #tpu.memory_space<vmem>>, vector<16x128xf32>,
    } else {
    }
    %true = arith.constant true
    %11 = arith.xori %8, %true : i1
    %12 = arith.extui %11 : i1 to i32
    %c0_i32_1 = arith.constant 0 : i32
    %13 = arith.cmpi ne, %12, %c0_i32_1 : i32
    scf.if %13 {
      %14 = arith.subi %0, %1 : i32
      %15 = tpu.iota {dimensions = array<i32: 0>} : vector<16x128xi32>
      %16 = vector.broadcast %14 : i32 to vector<16x128xi32>
      %17 = arith.addi %16, %15 : vector<16x128xi32>
      %18 = tpu.iota {dimensions = array<i32: 1>} : vector<16x128xi32>
      %19 = arith.subi %17, %18 : vector<16x128xi32>
      %c0_i32_2 = arith.constant 0 : i32
      %20 = vector.broadcast %c0_i32_2 : i32 to vector<16x128xi32>
      %21 = arith.cmpi slt, %19, %20 : vector<16x128xi32>
      %22 = arith.extui %21 : vector<16x128xi1> to vector<16x128xi32>
      %c16_i32_3 = arith.constant 16 : i32
      %23 = vector.broadcast %c16_i32_3 : i32 to vector<16x128xi32>
      %24 = arith.muli %22, %23 : vector<16x128xi32>
      %25 = math.absi %19 : vector<16x128xi32>
      %c8_i32 = arith.constant 8 : i32
      %26 = vector.broadcast %c8_i32 : i32 to vector<16x128xi32>
      %27 = arith.cmpi slt, %25, %26 : vector<16x128xi32>
      %c1_i32 = arith.constant 1 : i32
      %28 = vector.broadcast %c1_i32 : i32 to vector<16x128xi32>
      %29 = arith.maxsi %25, %28 : vector<16x128xi32>
      %30 = arith.sitofp %29 : vector<16x128xi32> to vector<16x128xf32>
      %cst = arith.constant 8.000000e+00 : f32
      %31 = vector.broadcast %cst : f32 to vector<16x128xf32>
      %32 = arith.divf %30, %31 : vector<16x128xf32>
      %33 = math.log %32 : vector<16x128xf32>
      %cst_4 = arith.constant 2.77258873 : f32
      %34 = vector.broadcast %cst_4 : f32 to vector<16x128xf32>
      %35 = arith.divf %33, %34 : vector<16x128xf32>
      %cst_5 = arith.constant 8.000000e+00 : f32
      %36 = vector.broadcast %cst_5 : f32 to vector<16x128xf32>
      %37 = arith.mulf %35, %36 : vector<16x128xf32>
      %38 = arith.fptosi %37 : vector<16x128xf32> to vector<16x128xi32>
      %c8_i32_6 = arith.constant 8 : i32
      %39 = vector.broadcast %c8_i32_6 : i32 to vector<16x128xi32>
      %40 = arith.addi %39, %38 : vector<16x128xi32>
      %c15_i32_7 = arith.constant 15 : i32
      %41 = vector.broadcast %c15_i32_7 : i32 to vector<16x128xi32>
      %42 = arith.minsi %40, %41 : vector<16x128xi32>
      %43 = arith.select %27, %25, %42 : vector<16x128xi1>, vector<16x128xi32>
      %44 = arith.addi %24, %43 : vector<16x128xi32>
      %c16_i32_8 = arith.constant 16 : i32
      %45 = vector.broadcast %c16_i32_8 : i32 to vector<16x128xi32>
      %46 = arith.cmpi sge, %44, %45 : vector<16x128xi32>
      %c24_i32 = arith.constant 24 : i32
      %47 = vector.broadcast %c24_i32 : i32 to vector<16x128xi32>
      %48 = arith.cmpi sge, %44, %47 : vector<16x128xi32>
      %c28_i32 = arith.constant 28 : i32
      %49 = vector.broadcast %c28_i32 : i32 to vector<16x128xi32>
      %50 = arith.cmpi sge, %44, %49 : vector<16x128xi32>
      %c30_i32 = arith.constant 30 : i32
      %51 = vector.broadcast %c30_i32 : i32 to vector<16x128xi32>
      %52 = arith.cmpi sge, %44, %51 : vector<16x128xi32>
      %c31_i32 = arith.constant 31 : i32
      %53 = vector.broadcast %c31_i32 : i32 to vector<16x128xi32>
      %54 = arith.cmpi sge, %44, %53 : vector<16x128xi32>
      %c31 = arith.constant 31 : index
      %55 = memref.load %arg2[%c31] : memref<32xf32, #tpu.memory_space<smem>>
      %c30 = arith.constant 30 : index
      %56 = memref.load %arg2[%c30] : memref<32xf32, #tpu.memory_space<smem>>
      %57 = vector.broadcast %55 : f32 to vector<16x128xf32>
      %58 = vector.broadcast %56 : f32 to vector<16x128xf32>
      %59 = arith.select %54, %57, %58 : vector<16x128xi1>, vector<16x128xf32>
      %c29_i32 = arith.constant 29 : i32
      %60 = vector.broadcast %c29_i32 : i32 to vector<16x128xi32>
      %61 = arith.cmpi sge, %44, %60 : vector<16x128xi32>
      %c29 = arith.constant 29 : index
      %62 = memref.load %arg2[%c29] : memref<32xf32, #tpu.memory_space<smem>>
      %c28 = arith.constant 28 : index
      %63 = memref.load %arg2[%c28] : memref<32xf32, #tpu.memory_space<smem>>
      %64 = vector.broadcast %62 : f32 to vector<16x128xf32>
      %65 = vector.broadcast %63 : f32 to vector<16x128xf32>
      %66 = arith.select %61, %64, %65 : vector<16x128xi1>, vector<16x128xf32>
      %67 = arith.select %52, %59, %66 : vector<16x128xi1>, vector<16x128xf32>
      %c26_i32 = arith.constant 26 : i32
      %68 = vector.broadcast %c26_i32 : i32 to vector<16x128xi32>
      %69 = arith.cmpi sge, %44, %68 : vector<16x128xi32>
      %c27_i32 = arith.constant 27 : i32
      %70 = vector.broadcast %c27_i32 : i32 to vector<16x128xi32>
      %71 = arith.cmpi sge, %44, %70 : vector<16x128xi32>
      %c27 = arith.constant 27 : index
      %72 = memref.load %arg2[%c27] : memref<32xf32, #tpu.memory_space<smem>>
      %c26 = arith.constant 26 : index
      %73 = memref.load %arg2[%c26] : memref<32xf32, #tpu.memory_space<smem>>
      %74 = vector.broadcast %72 : f32 to vector<16x128xf32>
      %75 = vector.broadcast %73 : f32 to vector<16x128xf32>
      %76 = arith.select %71, %74, %75 : vector<16x128xi1>, vector<16x128xf32>
      %c25_i32 = arith.constant 25 : i32
      %77 = vector.broadcast %c25_i32 : i32 to vector<16x128xi32>
      %78 = arith.cmpi sge, %44, %77 : vector<16x128xi32>
      %c25 = arith.constant 25 : index
      %79 = memref.load %arg2[%c25] : memref<32xf32, #tpu.memory_space<smem>>
      %c24 = arith.constant 24 : index
      %80 = memref.load %arg2[%c24] : memref<32xf32, #tpu.memory_space<smem>>
      %81 = vector.broadcast %79 : f32 to vector<16x128xf32>
      %82 = vector.broadcast %80 : f32 to vector<16x128xf32>
      %83 = arith.select %78, %81, %82 : vector<16x128xi1>, vector<16x128xf32>
      %84 = arith.select %69, %76, %83 : vector<16x128xi1>, vector<16x128xf32>
      %85 = arith.select %50, %67, %84 : vector<16x128xi1>, vector<16x128xf32>
      %c20_i32 = arith.constant 20 : i32
      %86 = vector.broadcast %c20_i32 : i32 to vector<16x128xi32>
      %87 = arith.cmpi sge, %44, %86 : vector<16x128xi32>
      %c22_i32 = arith.constant 22 : i32
      %88 = vector.broadcast %c22_i32 : i32 to vector<16x128xi32>
      %89 = arith.cmpi sge, %44, %88 : vector<16x128xi32>
      %c23_i32 = arith.constant 23 : i32
      %90 = vector.broadcast %c23_i32 : i32 to vector<16x128xi32>
      %91 = arith.cmpi sge, %44, %90 : vector<16x128xi32>
      %c23 = arith.constant 23 : index
      %92 = memref.load %arg2[%c23] : memref<32xf32, #tpu.memory_space<smem>>
      %c22 = arith.constant 22 : index
      %93 = memref.load %arg2[%c22] : memref<32xf32, #tpu.memory_space<smem>>
      %94 = vector.broadcast %92 : f32 to vector<16x128xf32>
      %95 = vector.broadcast %93 : f32 to vector<16x128xf32>
      %96 = arith.select %91, %94, %95 : vector<16x128xi1>, vector<16x128xf32>
      %c21_i32 = arith.constant 21 : i32
      %97 = vector.broadcast %c21_i32 : i32 to vector<16x128xi32>
      %98 = arith.cmpi sge, %44, %97 : vector<16x128xi32>
      %c21 = arith.constant 21 : index
      %99 = memref.load %arg2[%c21] : memref<32xf32, #tpu.memory_space<smem>>
      %c20 = arith.constant 20 : index
      %100 = memref.load %arg2[%c20] : memref<32xf32, #tpu.memory_space<smem>>
      %101 = vector.broadcast %99 : f32 to vector<16x128xf32>
      %102 = vector.broadcast %100 : f32 to vector<16x128xf32>
      %103 = arith.select %98, %101, %102 : vector<16x128xi1>, vector<16x128xf32>
      %104 = arith.select %89, %96, %103 : vector<16x128xi1>, vector<16x128xf32>
      %c18_i32 = arith.constant 18 : i32
      %105 = vector.broadcast %c18_i32 : i32 to vector<16x128xi32>
      %106 = arith.cmpi sge, %44, %105 : vector<16x128xi32>
      %c19_i32 = arith.constant 19 : i32
      %107 = vector.broadcast %c19_i32 : i32 to vector<16x128xi32>
      %108 = arith.cmpi sge, %44, %107 : vector<16x128xi32>
      %c19 = arith.constant 19 : index
      %109 = memref.load %arg2[%c19] : memref<32xf32, #tpu.memory_space<smem>>
      %c18 = arith.constant 18 : index
      %110 = memref.load %arg2[%c18] : memref<32xf32, #tpu.memory_space<smem>>
      %111 = vector.broadcast %109 : f32 to vector<16x128xf32>
      %112 = vector.broadcast %110 : f32 to vector<16x128xf32>
      %113 = arith.select %108, %111, %112 : vector<16x128xi1>, vector<16x128xf32>
      %c17_i32 = arith.constant 17 : i32
      %114 = vector.broadcast %c17_i32 : i32 to vector<16x128xi32>
      %115 = arith.cmpi sge, %44, %114 : vector<16x128xi32>
      %c17 = arith.constant 17 : index
      %116 = memref.load %arg2[%c17] : memref<32xf32, #tpu.memory_space<smem>>
      %c16 = arith.constant 16 : index
      %117 = memref.load %arg2[%c16] : memref<32xf32, #tpu.memory_space<smem>>
      %118 = vector.broadcast %116 : f32 to vector<16x128xf32>
      %119 = vector.broadcast %117 : f32 to vector<16x128xf32>
      %120 = arith.select %115, %118, %119 : vector<16x128xi1>, vector<16x128xf32>
      %121 = arith.select %106, %113, %120 : vector<16x128xi1>, vector<16x128xf32>
      %122 = arith.select %87, %104, %121 : vector<16x128xi1>, vector<16x128xf32>
      %123 = arith.select %48, %85, %122 : vector<16x128xi1>, vector<16x128xf32>
      %c8_i32_9 = arith.constant 8 : i32
      %124 = vector.broadcast %c8_i32_9 : i32 to vector<16x128xi32>
      %125 = arith.cmpi sge, %44, %124 : vector<16x128xi32>
      %c12_i32 = arith.constant 12 : i32
      %126 = vector.broadcast %c12_i32 : i32 to vector<16x128xi32>
      %127 = arith.cmpi sge, %44, %126 : vector<16x128xi32>
      %c14_i32 = arith.constant 14 : i32
      %128 = vector.broadcast %c14_i32 : i32 to vector<16x128xi32>
      %129 = arith.cmpi sge, %44, %128 : vector<16x128xi32>
      %c15_i32_10 = arith.constant 15 : i32
      %130 = vector.broadcast %c15_i32_10 : i32 to vector<16x128xi32>
      %131 = arith.cmpi sge, %44, %130 : vector<16x128xi32>
      %c15 = arith.constant 15 : index
      %132 = memref.load %arg2[%c15] : memref<32xf32, #tpu.memory_space<smem>>
      %c14 = arith.constant 14 : index
      %133 = memref.load %arg2[%c14] : memref<32xf32, #tpu.memory_space<smem>>
      %134 = vector.broadcast %132 : f32 to vector<16x128xf32>
      %135 = vector.broadcast %133 : f32 to vector<16x128xf32>
      %136 = arith.select %131, %134, %135 : vector<16x128xi1>, vector<16x128xf32>
      %c13_i32 = arith.constant 13 : i32
      %137 = vector.broadcast %c13_i32 : i32 to vector<16x128xi32>
      %138 = arith.cmpi sge, %44, %137 : vector<16x128xi32>
      %c13 = arith.constant 13 : index
      %139 = memref.load %arg2[%c13] : memref<32xf32, #tpu.memory_space<smem>>
      %c12 = arith.constant 12 : index
      %140 = memref.load %arg2[%c12] : memref<32xf32, #tpu.memory_space<smem>>
      %141 = vector.broadcast %139 : f32 to vector<16x128xf32>
      %142 = vector.broadcast %140 : f32 to vector<16x128xf32>
      %143 = arith.select %138, %141, %142 : vector<16x128xi1>, vector<16x128xf32>
      %144 = arith.select %129, %136, %143 : vector<16x128xi1>, vector<16x128xf32>
      %c10_i32 = arith.constant 10 : i32
      %145 = vector.broadcast %c10_i32 : i32 to vector<16x128xi32>
      %146 = arith.cmpi sge, %44, %145 : vector<16x128xi32>
      %c11_i32 = arith.constant 11 : i32
      %147 = vector.broadcast %c11_i32 : i32 to vector<16x128xi32>
      %148 = arith.cmpi sge, %44, %147 : vector<16x128xi32>
      %c11 = arith.constant 11 : index
      %149 = memref.load %arg2[%c11] : memref<32xf32, #tpu.memory_space<smem>>
      %c10 = arith.constant 10 : index
      %150 = memref.load %arg2[%c10] : memref<32xf32, #tpu.memory_space<smem>>
      %151 = vector.broadcast %149 : f32 to vector<16x128xf32>
      %152 = vector.broadcast %150 : f32 to vector<16x128xf32>
      %153 = arith.select %148, %151, %152 : vector<16x128xi1>, vector<16x128xf32>
      %c9_i32 = arith.constant 9 : i32
      %154 = vector.broadcast %c9_i32 : i32 to vector<16x128xi32>
      %155 = arith.cmpi sge, %44, %154 : vector<16x128xi32>
      %c9 = arith.constant 9 : index
      %156 = memref.load %arg2[%c9] : memref<32xf32, #tpu.memory_space<smem>>
      %c8 = arith.constant 8 : index
      %157 = memref.load %arg2[%c8] : memref<32xf32, #tpu.memory_space<smem>>
      %158 = vector.broadcast %156 : f32 to vector<16x128xf32>
      %159 = vector.broadcast %157 : f32 to vector<16x128xf32>
      %160 = arith.select %155, %158, %159 : vector<16x128xi1>, vector<16x128xf32>
      %161 = arith.select %146, %153, %160 : vector<16x128xi1>, vector<16x128xf32>
      %162 = arith.select %127, %144, %161 : vector<16x128xi1>, vector<16x128xf32>
      %c4_i32 = arith.constant 4 : i32
      %163 = vector.broadcast %c4_i32 : i32 to vector<16x128xi32>
      %164 = arith.cmpi sge, %44, %163 : vector<16x128xi32>
      %c6_i32 = arith.constant 6 : i32
      %165 = vector.broadcast %c6_i32 : i32 to vector<16x128xi32>
      %166 = arith.cmpi sge, %44, %165 : vector<16x128xi32>
      %c7_i32 = arith.constant 7 : i32
      %167 = vector.broadcast %c7_i32 : i32 to vector<16x128xi32>
      %168 = arith.cmpi sge, %44, %167 : vector<16x128xi32>
      %c7 = arith.constant 7 : index
      %169 = memref.load %arg2[%c7] : memref<32xf32, #tpu.memory_space<smem>>
      %c6 = arith.constant 6 : index
      %170 = memref.load %arg2[%c6] : memref<32xf32, #tpu.memory_space<smem>>
      %171 = vector.broadcast %169 : f32 to vector<16x128xf32>
      %172 = vector.broadcast %170 : f32 to vector<16x128xf32>
      %173 = arith.select %168, %171, %172 : vector<16x128xi1>, vector<16x128xf32>
      %c5_i32 = arith.constant 5 : i32
      %174 = vector.broadcast %c5_i32 : i32 to vector<16x128xi32>
      %175 = arith.cmpi sge, %44, %174 : vector<16x128xi32>
      %c5 = arith.constant 5 : index
      %176 = memref.load %arg2[%c5] : memref<32xf32, #tpu.memory_space<smem>>
      %c4 = arith.constant 4 : index
      %177 = memref.load %arg2[%c4] : memref<32xf32, #tpu.memory_space<smem>>
      %178 = vector.broadcast %176 : f32 to vector<16x128xf32>
      %179 = vector.broadcast %177 : f32 to vector<16x128xf32>
      %180 = arith.select %175, %178, %179 : vector<16x128xi1>, vector<16x128xf32>
      %181 = arith.select %166, %173, %180 : vector<16x128xi1>, vector<16x128xf32>
      %c2_i32 = arith.constant 2 : i32
      %182 = vector.broadcast %c2_i32 : i32 to vector<16x128xi32>
      %183 = arith.cmpi sge, %44, %182 : vector<16x128xi32>
      %c3_i32 = arith.constant 3 : i32
      %184 = vector.broadcast %c3_i32 : i32 to vector<16x128xi32>
      %185 = arith.cmpi sge, %44, %184 : vector<16x128xi32>
      %c3 = arith.constant 3 : index
      %186 = memref.load %arg2[%c3] : memref<32xf32, #tpu.memory_space<smem>>
      %c2 = arith.constant 2 : index
      %187 = memref.load %arg2[%c2] : memref<32xf32, #tpu.memory_space<smem>>
      %188 = vector.broadcast %186 : f32 to vector<16x128xf32>
      %189 = vector.broadcast %187 : f32 to vector<16x128xf32>
      %190 = arith.select %185, %188, %189 : vector<16x128xi1>, vector<16x128xf32>
      %c1_i32_11 = arith.constant 1 : i32
      %191 = vector.broadcast %c1_i32_11 : i32 to vector<16x128xi32>
      %192 = arith.cmpi sge, %44, %191 : vector<16x128xi32>
      %c1 = arith.constant 1 : index
      %193 = memref.load %arg2[%c1] : memref<32xf32, #tpu.memory_space<smem>>
      %c0 = arith.constant 0 : index
      %194 = memref.load %arg2[%c0] : memref<32xf32, #tpu.memory_space<smem>>
      %195 = vector.broadcast %193 : f32 to vector<16x128xf32>
      %196 = vector.broadcast %194 : f32 to vector<16x128xf32>
      %197 = arith.select %192, %195, %196 : vector<16x128xi1>, vector<16x128xf32>
      %198 = arith.select %183, %190, %197 : vector<16x128xi1>, vector<16x128xf32>
      %199 = arith.select %164, %181, %198 : vector<16x128xi1>, vector<16x128xf32>
      %200 = arith.select %125, %162, %199 : vector<16x128xi1>, vector<16x128xf32>
      %201 = arith.select %46, %123, %200 : vector<16x128xi1>, vector<16x128xf32>
      %c0_12 = arith.constant 0 : index
      %c0_13 = arith.constant 0 : index
      %202 = vector.load %arg3[%c0_12, %c0_13] : memref<16x128xf32, #tpu.memory_space<vmem>>, vector<16x128xf32>
      tpu.vector_store %arg3[%c0_12, %c0_13], %201 {strides = array<i32>} : memref<16x128xf32, #tpu.memory_space<vmem>>, vector<16x128xf32>,
    } else {
    }
    return
  }
  func.func @transform_0(%arg0: i32, %arg1: i32) -> i32 {
    %c0_i32 = arith.constant 0 : i32
    %c0_i32_0 = arith.constant 0 : i32
    return %c0_i32 : i32
  }
  func.func @transform_1(%arg0: i32, %arg1: i32) -> (i32, i32) {
    %c0_i32 = arith.constant 0 : i32
    return %arg0, %arg1 : i32, i32
  }
}

</mosaic_0001>

<llo_original>
// kernel: tpu_custom_call.1
$region0: #{tpu_custom_call.1}
  #allocation0 [shape = 'u32[]', space=smem, size = 0x4, offset = 0x4, fixed_abs, tag = 'smem constant byte address 0x4 - core index']
  #allocation1 [shape = 'u32[144,128]{1,0:T(1,128)}', space=vmem, size = 0x12000, scoped, tag = 'internal scratch']
  %s0 = inlined_call_operand.hbm [shape: f32[32], index: 0, kind: input, shape index: {}]
  %s1 = inlined_call_operand.hbm [shape: f32[16,128], index: 1, kind: output, shape index: {}]
  %s2 = sld [smem:[#allocation0]]
  $region26: #{tpu_custom_call.1} parent=0
    _
  %s4 = ssub.s32 1, %s2
  %s5 = scalar_select 0, %s4, %s2
  $region1: #{tpu_custom_call.1} parent=0
    #allocation2 [shape = 'u8[512]{0}', space=smem, size = 0x200, scoped, tag = 'input window, operand 0, single buffered']
    #allocation3 [shape = 's32[1]{0}', space=sflag, size = 0x4, scoped, tag = 'scoped memory for tpu_custom_call.1']
    #allocation4 [shape = 's32[1]{0}', space=sflag, size = 0x4, scoped, tag = 'scoped memory for tpu_custom_call.1']
    #allocation5 [shape = 'u8[8192]{0}', space=vmem, size = 0x2000, scoped, tag = 'output window, operand 0, single buffered']
    %6 = vsyncpa [#allocation4], 0
    %7 = vsyncpa [#allocation3], 0
    // Predicated region
    $region2: #{tpu_custom_call.1} parent=1 // pred_check
      _
    $region3: #{tpu_custom_call.1} parent=1 // pred_check_branch
      %9 = sbr.rel (0) target = $region5
    $region4: #{tpu_custom_call.1} parent=1 // pred_region
      %s11 = ssub.s32 16, 16
      %12 = vsyncadd [#allocation4], %s11
      %15 = dma.hbm_to_smem %s0, 16, [#allocation2], [#allocation4]
    $region5: #{tpu_custom_call.1} parent=1 // pred_fallthru
      _
    // Predicated region
    $region6: #{tpu_custom_call.1} parent=1 // pred_check
      _
    $region7: #{tpu_custom_call.1} parent=1 // pred_check_branch
      %17 = sbr.rel (0) target = $region9
    $region8: #{tpu_custom_call.1} parent=1 // pred_region
      %18 = dma.done [#allocation4], 16
    $region9: #{tpu_custom_call.1} parent=1 // pred_fallthru
      _
    %19 = sfence
    %s20 = smul.u32 0, 16
    %s21 = smul.u32 0, 128
    %s22 = sadd.s32 %s21, 127
    %s23 = ssub.s32 %s20, %s22
    %s24 = sadd.s32 %s20, 15
    %s25 = ssub.s32 %s24, %s21
    %p26 = scmp.ge.s32.totalorder %s23, 128
    %p27 = scmp.le.s32.totalorder %s25, 4294967168
    %p28 = por %p26, %p27
    // Predicated region
    $region10: #{tpu_custom_call.1} parent=1 // pred_check
      %p29 = pneg %p28
    $region11: #{tpu_custom_call.1} parent=1 // pred_check_branch
      %31 = sbr.rel (%p29) target = $region13
    $region12: #{tpu_custom_call.1} parent=1 // pred_region
      %s32 = sld [smem:[#allocation2 + $0xf]]
      %s33 = sld [smem:[#allocation2 + $0x1f]]
      %s34 = scalar_select %p26, %s32, %s33
      %v35 = vstv %s34
      %36 = vst [vmem:[#allocation5] sm:$0xff] %v35
      %37 = vst [vmem:[#allocation5 + $0x8] sm:$0xff] %v35
    $region13: #{tpu_custom_call.1} parent=1 // pred_fallthru
      _
    %p38 = pneg %p28
    // Predicated region
    $region14: #{tpu_custom_call.1} parent=1 // pred_check
      _
    $region15: #{tpu_custom_call.1} parent=1 // pred_check_branch
      %40 = sbr.rel (%p28) target = $region17
    $region16: #{tpu_custom_call.1} parent=1 // pred_region
      %s41 = ssub.s32 %s20, %s21
      %v42 = vlaneseq
      %v43 = vshrl.u32 %v42, 7
      %v44 = vadd.s32 %v43, 8
      %v45 = vstv %s41
      %v46 = vadd.s32 %v45, %v43
      %v47 = vadd.s32 %v45, %v44
      %v48 = vlaneseq
      %v49 = vand.u32 %v48, 127
      %v50 = vsub.s32 %v46, %v49
      %v51 = vsub.s32 %v47, %v49
      %vm52 = vcmp.lt.s32.totalorder %v50, 0
      %vm53 = vcmp.lt.s32.totalorder %v51, 0
      %v54 = vsel %vm52, 1, 0
      %v55 = vsel %vm53, 1, 0
      %v56 = vmul.u32 %v54, 16
      %v57 = vmul.u32 %v55, 16
      %v58 = vsub.s32 0, %v50
      %v59 = vsel %vm52, %v58, %v50
      %v60 = vsub.s32 0, %v51
      %v61 = vsel %vm53, %v60, %v51
      %vm62 = vcmp.lt.s32.totalorder %v59, 8
      %vm63 = vcmp.lt.s32.totalorder %v61, 8
      %vm64 = vcmp.gt.s32.totalorder %v59, 1
      %v65 = vsel %vm64, %v59, 1
      %vm66 = vcmp.gt.s32.totalorder %v61, 1
      %v67 = vsel %vm66, %v61, 1
      %v68 = vcvt.s32.f32 %v65
      %v69 = vcvt.s32.f32 %v67
      %v70 = vrcp.pop 8.0
      %v71 = vmul.f32 %v68, %v70
      %v72 = vmul.f32 %v69, %v70
      %v73 = vlog2.pop %v71
      %v74 = vmul.f32 %v73, 0.6931472
      %v75 = vlog2.pop %v72
      %v76 = vmul.f32 %v75, 0.6931472
      %v77 = vrcp.pop 2.7725887
      %v78 = vmul.f32 %v74, %v77
      %v79 = vmul.f32 %v76, %v77
      %v80 = vmul.f32 %v78, 8.0
      %v81 = vmul.f32 %v79, 8.0
      %v82 = vcvt.f32.s32.to.zero.pseudo %v80
      %v83 = vcvt.f32.s32.to.zero.pseudo %v81
      %v84 = vadd.s32 %v82, 8
      %v85 = vadd.s32 %v83, 8
      %vm86 = vcmp.lt.s32.totalorder %v84, 15
      %v87 = vsel %vm86, %v84, 15
      %vm88 = vcmp.lt.s32.totalorder %v85, 15
      %v89 = vsel %vm88, %v85, 15
      %v90 = vsel %vm62, %v59, %v87
      %v91 = vsel %vm63, %v61, %v89
      %v92 = vadd.s32 %v56, %v90
      %v93 = vadd.s32 %v57, %v91
      %vm94 = vcmp.ge.s32.totalorder %v92, 16
      %vm95 = vcmp.ge.s32.totalorder %v93, 16
      %vm96 = vcmp.ge.s32.totalorder %v92, 24
      %vm97 = vcmp.ge.s32.totalorder %v93, 24
      %vm98 = vcmp.ge.s32.totalorder %v92, 28
      %vm99 = vcmp.ge.s32.totalorder %v93, 28
      %vm100 = vcmp.ge.s32.totalorder %v92, 30
      %vm101 = vcmp.ge.s32.totalorder %v93, 30
      %vm102 = vcmp.ge.s32.totalorder %v92, 31
      %vm103 = vcmp.ge.s32.totalorder %v93, 31
      %s104 = sld [smem:[#allocation2 + $0x1f]]
      %s105 = sld [smem:[#allocation2 + $0x1e]]
      %v106 = vstv %s104
      %v107 = vstv %s105
      %v108 = vsel %vm102, %v106, %v107
      %v109 = vsel %vm103, %v106, %v107
      %vm110 = vcmp.ge.s32.totalorder %v92, 29
      %vm111 = vcmp.ge.s32.totalorder %v93, 29
      %s112 = sld [smem:[#allocation2 + $0x1d]]
      %s113 = sld [smem:[#allocation2 + $0x1c]]
      %v114 = vstv %s112
      %v115 = vstv %s113
      %v116 = vsel %vm110, %v114, %v115
      %v117 = vsel %vm111, %v114, %v115
      %v118 = vsel %vm100, %v108, %v116
      %v119 = vsel %vm101, %v109, %v117
      %vm120 = vcmp.ge.s32.totalorder %v92, 26
      %vm121 = vcmp.ge.s32.totalorder %v93, 26
      %vm122 = vcmp.ge.s32.totalorder %v92, 27
      %vm123 = vcmp.ge.s32.totalorder %v93, 27
      %s124 = sld [smem:[#allocation2 + $0x1b]]
      %s125 = sld [smem:[#allocation2 + $0x1a]]
      %v126 = vstv %s124
      %v127 = vstv %s125
      %v128 = vsel %vm122, %v126, %v127
      %v129 = vsel %vm123, %v126, %v127
      %vm130 = vcmp.ge.s32.totalorder %v92, 25
      %vm131 = vcmp.ge.s32.totalorder %v93, 25
      %s132 = sld [smem:[#allocation2 + $0x19]]
      %s133 = sld [smem:[#allocation2 + $0x18]]
      %v134 = vstv %s132
      %v135 = vstv %s133
      %v136 = vsel %vm130, %v134, %v135
      %v137 = vsel %vm131, %v134, %v135
      %v138 = vsel %vm120, %v128, %v136
      %v139 = vsel %vm121, %v129, %v137
      %v140 = vsel %vm98, %v118, %v138
      %v141 = vsel %vm99, %v119, %v139
      %vm142 = vcmp.ge.s32.totalorder %v92, 20
      %vm143 = vcmp.ge.s32.totalorder %v93, 20
      %vm144 = vcmp.ge.s32.totalorder %v92, 22
      %vm145 = vcmp.ge.s32.totalorder %v93, 22
      %vm146 = vcmp.ge.s32.totalorder %v92, 23
      %vm147 = vcmp.ge.s32.totalorder %v93, 23
      %s148 = sld [smem:[#allocation2 + $0x17]]
      %s149 = sld [smem:[#allocation2 + $0x16]]
      %v150 = vstv %s148
      %v151 = vstv %s149
      %v152 = vsel %vm146, %v150, %v151
      %v153 = vsel %vm147, %v150, %v151
      %vm154 = vcmp.ge.s32.totalorder %v92, 21
      %vm155 = vcmp.ge.s32.totalorder %v93, 21
      %s156 = sld [smem:[#allocation2 + $0x15]]
      %s157 = sld [smem:[#allocation2 + $0x14]]
      %v158 = vstv %s156
      %v159 = vstv %s157
      %v160 = vsel %vm154, %v158, %v159
      %v161 = vsel %vm155, %v158, %v159
      %v162 = vsel %vm144, %v152, %v160
      %v163 = vsel %vm145, %v153, %v161
      %vm164 = vcmp.ge.s32.totalorder %v92, 18
      %vm165 = vcmp.ge.s32.totalorder %v93, 18
      %vm166 = vcmp.ge.s32.totalorder %v92, 19
      %vm167 = vcmp.ge.s32.totalorder %v93, 19
      %s168 = sld [smem:[#allocation2 + $0x13]]
      %s169 = sld [smem:[#allocation2 + $0x12]]
      %v170 = vstv %s168
      %v171 = vstv %s169
      %v172 = vsel %vm166, %v170, %v171
      %v173 = vsel %vm167, %v170, %v171
      %vm174 = vcmp.ge.s32.totalorder %v92, 17
      %vm175 = vcmp.ge.s32.totalorder %v93, 17
      %s176 = sld [smem:[#allocation2 + $0x11]]
      %s177 = sld [smem:[#allocation2 + $0x10]]
      %v178 = vstv %s176
      %v179 = vstv %s177
      %v180 = vsel %vm174, %v178, %v179
      %v181 = vsel %vm175, %v178, %v179
      %v182 = vsel %vm164, %v172, %v180
      %v183 = vsel %vm165, %v173, %v181
      %v184 = vsel %vm142, %v162, %v182
      %v185 = vsel %vm143, %v163, %v183
      %v186 = vsel %vm96, %v140, %v184
      %v187 = vsel %vm97, %v141, %v185
      %vm188 = vcmp.ge.s32.totalorder %v92, 8
      %vm189 = vcmp.ge.s32.totalorder %v93, 8
      %vm190 = vcmp.ge.s32.totalorder %v92, 12
      %vm191 = vcmp.ge.s32.totalorder %v93, 12
      %vm192 = vcmp.ge.s32.totalorder %v92, 14
      %vm193 = vcmp.ge.s32.totalorder %v93, 14
      %vm194 = vcmp.ge.s32.totalorder %v92, 15
      %vm195 = vcmp.ge.s32.totalorder %v93, 15
      %s196 = sld [smem:[#allocation2 + $0xf]]
      %s197 = sld [smem:[#allocation2 + $0xe]]
      %v198 = vstv %s196
      %v199 = vstv %s197
      %v200 = vsel %vm194, %v198, %v199
      %v201 = vsel %vm195, %v198, %v199
      %vm202 = vcmp.ge.s32.totalorder %v92, 13
      %vm203 = vcmp.ge.s32.totalorder %v93, 13
      %s204 = sld [smem:[#allocation2 + $0xd]]
      %s205 = sld [smem:[#allocation2 + $0xc]]
      %v206 = vstv %s204
      %v207 = vstv %s205
      %v208 = vsel %vm202, %v206, %v207
      %v209 = vsel %vm203, %v206, %v207
      %v210 = vsel %vm192, %v200, %v208
      %v211 = vsel %vm193, %v201, %v209
      %vm212 = vcmp.ge.s32.totalorder %v92, 10
      %vm213 = vcmp.ge.s32.totalorder %v93, 10
      %vm214 = vcmp.ge.s32.totalorder %v92, 11
      %vm215 = vcmp.ge.s32.totalorder %v93, 11
      %s216 = sld [smem:[#allocation2 + $0xb]]
      %s217 = sld [smem:[#allocation2 + $0xa]]
      %v218 = vstv %s216
      %v219 = vstv %s217
      %v220 = vsel %vm214, %v218, %v219
      %v221 = vsel %vm215, %v218, %v219
      %vm222 = vcmp.ge.s32.totalorder %v92, 9
      %vm223 = vcmp.ge.s32.totalorder %v93, 9
      %s224 = sld [smem:[#allocation2 + $0x9]]
      %s225 = sld [smem:[#allocation2 + $0x8]]
      %v226 = vstv %s224
      %v227 = vstv %s225
      %v228 = vsel %vm222, %v226, %v227
      %v229 = vsel %vm223, %v226, %v227
      %v230 = vsel %vm212, %v220, %v228
      %v231 = vsel %vm213, %v221, %v229
      %v232 = vsel %vm190, %v210, %v230
      %v233 = vsel %vm191, %v211, %v231
      %vm234 = vcmp.ge.s32.totalorder %v92, 4
      %vm235 = vcmp.ge.s32.totalorder %v93, 4
      %vm236 = vcmp.ge.s32.totalorder %v92, 6
      %vm237 = vcmp.ge.s32.totalorder %v93, 6
      %vm238 = vcmp.ge.s32.totalorder %v92, 7
      %vm239 = vcmp.ge.s32.totalorder %v93, 7
      %s240 = sld [smem:[#allocation2 + $0x7]]
      %s241 = sld [smem:[#allocation2 + $0x6]]
      %v242 = vstv %s240
      %v243 = vstv %s241
      %v244 = vsel %vm238, %v242, %v243
      %v245 = vsel %vm239, %v242, %v243
      %vm246 = vcmp.ge.s32.totalorder %v92, 5
      %vm247 = vcmp.ge.s32.totalorder %v93, 5
      %s248 = sld [smem:[#allocation2 + $0x5]]
      %s249 = sld [smem:[#allocation2 + $0x4]]
      %v250 = vstv %s248
      %v251 = vstv %s249
      %v252 = vsel %vm246, %v250, %v251
      %v253 = vsel %vm247, %v250, %v251
      %v254 = vsel %vm236, %v244, %v252
      %v255 = vsel %vm237, %v245, %v253
      %vm256 = vcmp.ge.s32.totalorder %v92, 2
      %vm257 = vcmp.ge.s32.totalorder %v93, 2
      %vm258 = vcmp.ge.s32.totalorder %v92, 3
      %vm259 = vcmp.ge.s32.totalorder %v93, 3
      %s260 = sld [smem:[#allocation2 + $0x3]]
      %s261 = sld [smem:[#allocation2 + $0x2]]
      %v262 = vstv %s260
      %v263 = vstv %s261
      %v264 = vsel %vm258, %v262, %v263
      %v265 = vsel %vm259, %v262, %v263
      %vm266 = vcmp.ge.s32.totalorder %v92, 1
      %vm267 = vcmp.ge.s32.totalorder %v93, 1
      %s268 = sld [smem:[#allocation2 + $0x1]]
      %s269 = sld [smem:[#allocation2]]
      %v270 = vstv %s268
      %v271 = vstv %s269
      %v272 = vsel %vm266, %v270, %v271
      %v273 = vsel %vm267, %v270, %v271
      %v274 = vsel %vm256, %v264, %v272
      %v275 = vsel %vm257, %v265, %v273
      %v276 = vsel %vm234, %v254, %v274
      %v277 = vsel %vm235, %v255, %v275
      %v278 = vsel %vm188, %v232, %v276
      %v279 = vsel %vm189, %v233, %v277
      %v280 = vsel %vm94, %v186, %v278
      %v281 = vsel %vm95, %v187, %v279
      %282 = vst [vmem:[#allocation5] sm:$0xff] %v280
      %283 = vst [vmem:[#allocation5 + $0x8] sm:$0xff] %v281
    $region17: #{tpu_custom_call.1} parent=1 // pred_fallthru
      _
    // Predicated region
    $region18: #{tpu_custom_call.1} parent=1 // pred_check
      _
    $region19: #{tpu_custom_call.1} parent=1 // pred_check_branch
      %285 = sbr.rel (0) target = $region21
    $region20: #{tpu_custom_call.1} parent=1 // pred_region
      %s287 = ssub.s32 256, 256
      %288 = vsyncadd [#allocation3], %s287
      %s289 = sshll.u32 [#allocation5], 4
      %s290 = int_to_ptr.vmem [resolvable:$true] %s289
      %295 = dma.vmem_to_hbm [thread:$0]  %s290, 256, %s1, [#allocation3], 128, 128, 8
    $region21: #{tpu_custom_call.1} parent=1 // pred_fallthru
      _
    // Predicated region
    $region22: #{tpu_custom_call.1} parent=1 // pred_check
      _
    $region23: #{tpu_custom_call.1} parent=1 // pred_check_branch
      %297 = sbr.rel (0) target = $region25
    $region24: #{tpu_custom_call.1} parent=1 // pred_region
      %298 = dma.done [#allocation3], 256
    $region25: #{tpu_custom_call.1} parent=1 // pred_fallthru
      _
    %299 = vsyncpa [#allocation3], 1
    %300 = vsyncpa [#allocation4], 1

</llo_original>
